<compile_context>
chip_gen: v6e
topology: v6e:2x2x1
jax: 0.10.0
libtpu: 0.0.40
codegen_flags: <defaults>
</compile_context>

<pallas_src>
import functools
import math

import jax
import jax.numpy as jnp
from jax import lax
from jax.experimental import pallas as pl
from jax.experimental.pallas import tpu as pltpu

EPS = 1e-5

_TILE_BYTES_CAP = 4 * 1024 * 1024          # per-buffer tile cap (~4 MiB)
_TILED_VMEM_LIMIT = 32 * 1024 * 1024        # safe on v5e/v6e/v7x
_RESIDENT_VMEM_LIMIT = 48 * 1024 * 1024     # below v7x 64 MiB physical
_RESIDENT_MAX_F32_BYTES = 6 * 1024 * 1024   # resident fast-path threshold
_NUM_CORE_SPLITS = 2                        # v7x has 2 TCs; serial (harmless) on v5e/v6e


# ---------------------------------------------------------------------------
# Resident fast path: whole (N, E) matrix in one VMEM block (one HBM read).
# ---------------------------------------------------------------------------
def _bn_resident_kernel(x_ref, w_ref, b_ref, o_ref):
    x = x_ref[...].astype(jnp.float32)                           # (N, E)
    n = x.shape[0]
    mean = jnp.sum(x, axis=0, keepdims=True) * (1.0 / n)         # (1, E)
    centered = x - mean
    var = jnp.sum(centered * centered, axis=0, keepdims=True) * (1.0 / n)
    inv_std = lax.rsqrt(var + EPS)
    scale = w_ref[...].astype(jnp.float32) * inv_std             # gamma / std
    shift = b_ref[...].astype(jnp.float32) - mean * scale        # beta - mean*scale
    o_ref[...] = (x * scale + shift).astype(o_ref.dtype)


def _bn_resident(x2d, weight, bias):
    n, e = x2d.shape
    cost = pl.CostEstimate(flops=8 * n * e, transcendentals=e,
                           bytes_accessed=2 * n * e * x2d.dtype.itemsize)
    return pl.pallas_call(
        _bn_resident_kernel,
        out_shape=jax.ShapeDtypeStruct((n, e), x2d.dtype),
        in_specs=[
            pl.BlockSpec((n, e), lambda: (0, 0)),
            pl.BlockSpec((1, e), lambda: (0, 0)),
            pl.BlockSpec((1, e), lambda: (0, 0)),
        ],
        out_specs=pl.BlockSpec((n, e), lambda: (0, 0)),
        compiler_params=pltpu.CompilerParams(
            vmem_limit_bytes=_RESIDENT_VMEM_LIMIT),
        cost_estimate=cost,
    )(x2d, weight.reshape(1, e), bias.reshape(1, e))


# ---------------------------------------------------------------------------
# Tiled path, phase 1: per-core, per-lane Welford/Chan partial statistics.
#   grid = (num_core_splits [parallel], tiles_per_core [arbitrary])
#   outputs: (num_core_splits, 8, P) f32 mean / M2 (8 identical sublanes so
#   the block shape stays (8,128)-friendly; row 0 is read back in JAX).
# ---------------------------------------------------------------------------
def _bn_stats_kernel(x_ref, mean_ref, m2_ref, *, rows_valid, tiles_per_core, ragged):
    c = pl.program_id(0)
    i = pl.program_id(1)
    tile_rows = x_ref.shape[0]

    @pl.when(i == 0)
    def _():
        mean_ref[...] = jnp.zeros_like(mean_ref)
        m2_ref[...] = jnp.zeros_like(m2_ref)

    x = x_ref[...].astype(jnp.float32)                           # (tile_rows, P)
    core_row0 = c * (tiles_per_core * tile_rows)
    row0 = core_row0 + i * tile_rows

    if ragged:
        ridx = row0 + lax.broadcasted_iota(jnp.int32, (tile_rows, 1), 0)
        valid = ridx < rows_valid
        cnt = jnp.clip(rows_valid - row0, 0, tile_rows).astype(jnp.float32)
        cnt_prev = jnp.clip(rows_valid - core_row0, 0, i * tile_rows).astype(jnp.float32)
        xm = jnp.where(valid, x, 0.0)                            # robust to pad garbage
    else:
        cnt = jnp.float32(tile_rows)
        cnt_prev = (i * tile_rows).astype(jnp.float32)
        xm = x

    tile_mean = jnp.sum(xm, axis=0, keepdims=True) / jnp.maximum(cnt, 1.0)   # (1, P)
    if ragged:
        centered = jnp.where(valid, x - tile_mean, 0.0)
    else:
        centered = x - tile_mean
    tile_m2 = jnp.sum(centered * centered, axis=0, keepdims=True)            # (1, P)

    # Chan parallel-variance combine of (running per-core) with (this tile);
    # robust for large-mean data (avoids E[x^2] - mean^2 cancellation).
    new_cnt = cnt_prev + cnt
    inv_new = 1.0 / jnp.maximum(new_cnt, 1.0)
    delta = tile_mean - mean_ref[...]                            # -> (1, 8, P)
    mean_ref[...] = mean_ref[...] + delta * (cnt * inv_new)
    m2_ref[...] = m2_ref[...] + tile_m2 + delta * delta * (cnt_prev * cnt * inv_new)


# ---------------------------------------------------------------------------
# Tiled path, phase 2: y = x * scale + shift (single multiply-add per element).
# ---------------------------------------------------------------------------
def _bn_apply_kernel(x_ref, scale_ref, shift_ref, o_ref):
    x = x_ref[...].astype(jnp.float32)
    o_ref[...] = (x * scale_ref[...] + shift_ref[...]).astype(o_ref.dtype)


def _bn_tiled(x2d, weight, bias, *, row_tile):
    n, e = x2d.shape
    itemsize = x2d.dtype.itemsize

    # Lane-dense packing: fold r consecutive rows into one row so the lane
    # dimension is a multiple of 128 (unmasked full-width vector stores).
    r = 1
    if e < 128:
        r_cand = math.lcm(e, 128) // e
        if n % r_cand == 0:
            r = r_cand
    p = r * e
    n_p = n // r
    xp = x2d.reshape(n_p, p)                                     # contiguous view

    # Row tile: multiple of 8, capped at ~4 MiB per buffer.
    cap_rows = max(8, _TILE_BYTES_CAP // (p * max(itemsize, 4)))
    target = min(row_tile, cap_rows, ((n_p + 7) // 8) * 8)
    tile_rows = max(8, (target // 8) * 8)

    tiles_total = (n_p + tile_rows - 1) // tile_rows
    n_splits = _NUM_CORE_SPLITS if tiles_total >= _NUM_CORE_SPLITS else 1
    tiles_per_core = (tiles_total + n_splits - 1) // n_splits
    has_empty_tiles = (n_splits * tiles_per_core != tiles_total)
    ragged = (n_p % tile_rows != 0) or has_empty_tiles

    if has_empty_tiles:
        # Empty trailing tiles on the last core re-read the final block
        # (clamped index) and are fully masked out (cnt == 0) in-kernel.
        x_index_map = lambda c, i: (jnp.minimum(c * tiles_per_core + i,
                                                tiles_total - 1), 0)
    else:
        x_index_map = lambda c, i: (c * tiles_per_core + i, 0)

    # ---- Phase 1: partial per-(core, lane-group, channel) mean / M2 --------
    stats_cost = pl.CostEstimate(flops=5 * n * e, transcendentals=0,
                                 bytes_accessed=n * e * itemsize)
    mean_p, m2_p = pl.pallas_call(
        functools.partial(_bn_stats_kernel, rows_valid=n_p,
                          tiles_per_core=tiles_per_core, ragged=ragged),
        out_shape=(
            jax.ShapeDtypeStruct((n_splits, 8, p), jnp.float32),
            jax.ShapeDtypeStruct((n_splits, 8, p), jnp.float32),
        ),
        grid=(n_splits, tiles_per_core),
        in_specs=[pl.BlockSpec((tile_rows, p), x_index_map)],
        out_specs=(
            pl.BlockSpec((1, 8, p), lambda c, i: (c, 0, 0)),
            pl.BlockSpec((1, 8, p), lambda c, i: (c, 0, 0)),
        ),
        compiler_params=pltpu.CompilerParams(
            dimension_semantics=("parallel", "arbitrary"),
            vmem_limit_bytes=_TILED_VMEM_LIMIT),
        cost_estimate=stats_cost,
    )(xp)

    # ---- Tiny JAX glue: weighted Chan combine over cores x lane groups, then
    # fold the affine transform into one per-channel scale/shift. (Kept in JAX
    # because the per-core partials only meet here; arrays are a few KB.) ----
    mean_g = mean_p[:, 0, :].reshape(n_splits, r, e)
    m2_g = m2_p[:, 0, :].reshape(n_splits, r, e)
    rows_per_core = tiles_per_core * tile_rows
    counts = jnp.asarray(
        [float(min(max(n_p - c * rows_per_core, 0), rows_per_core))
         for c in range(n_splits)],
        dtype=jnp.float32).reshape(n_splits, 1, 1)
    inv_n = 1.0 / float(n)                                       # sum(counts)*r == n
    mean_c = jnp.sum(counts * mean_g, axis=(0, 1)) * inv_n       # (e,)
    m2_c = jnp.sum(m2_g + counts * (mean_g - mean_c) ** 2, axis=(0, 1))
    var = (m2_c * inv_n).reshape(1, e)                           # biased variance
    inv_std = lax.rsqrt(var + EPS)
    scale = weight.reshape(1, e).astype(jnp.float32) * inv_std
    shift = bias.reshape(1, e).astype(jnp.float32) - mean_c.reshape(1, e) * scale
    scale_p = jnp.tile(scale, (1, r))                            # (1, P)
    shift_p = jnp.tile(shift, (1, r))

    # ---- Phase 2: normalize (embarrassingly parallel over row tiles; the
    # ragged last block relies on Pallas' masked partial-block writes). ------
    apply_cost = pl.CostEstimate(flops=2 * n * e, transcendentals=0,
                                 bytes_accessed=2 * n * e * itemsize)
    out_p = pl.pallas_call(
        _bn_apply_kernel,
        out_shape=jax.ShapeDtypeStruct((n_p, p), x2d.dtype),
        grid=(tiles_total,),
        in_specs=[
            pl.BlockSpec((tile_rows, p), lambda i: (i, 0)),
            pl.BlockSpec((1, p), lambda i: (0, 0)),
            pl.BlockSpec((1, p), lambda i: (0, 0)),
        ],
        out_specs=pl.BlockSpec((tile_rows, p), lambda i: (i, 0)),
        compiler_params=pltpu.CompilerParams(
            dimension_semantics=("parallel",),
            vmem_limit_bytes=_TILED_VMEM_LIMIT),
        cost_estimate=apply_cost,
    )(xp, scale_p, shift_p)

    return out_p.reshape(n, e)


def normalization_forward(x, weight, bias, *, row_tile=8192, force_tiled=False):
    """
    x:      (batch, graph_size, embed_dim)
    weight: (embed_dim,)  BatchNorm1d gamma
    bias:   (embed_dim,)  BatchNorm1d beta
    returns (batch, graph_size, embed_dim)
    """
    batch, graph_size, embed_dim = x.shape
    n = batch * graph_size
    x2d = x.reshape(n, embed_dim)

    # Resident fast path (1 HBM read + 1 write) for inputs whose f32 working
    # set comfortably fits VMEM on every TPU generation; otherwise the
    # pipelined two-phase tiled path (2 reads + 1 write).
    resident_ok = (not force_tiled) and (n * embed_dim * 4 <= _RESIDENT_MAX_F32_BYTES)
    if resident_ok:
        out2d = _bn_resident(x2d, weight, bias)
    else:
        out2d = _bn_tiled(x2d, weight, bias, row_tile=row_tile)

    return out2d.reshape(batch, graph_size, embed_dim)


def _reference(x, weight, bias):
    n = x.shape[0] * x.shape[1]
    e = x.shape[-1]
    x2d = x.reshape(n, e).astype(jnp.float32)
    mean = jnp.mean(x2d, axis=0, keepdims=True)
    var = jnp.mean((x2d - mean) ** 2, axis=0, keepdims=True)
    y = (x2d - mean) / jnp.sqrt(var + EPS) * weight + bias
    return y.reshape(x.shape).astype(x.dtype)


def _check(name, out, ref):
    assert out.shape == ref.shape, f"{name}: shape mismatch {out.shape} vs {ref.shape}"
    assert jnp.allclose(out, ref, atol=1e-5, rtol=1e-5), f"{name}: mismatch vs reference"


if __name__ == "__main__":
    key = jax.random.PRNGKey(0)
    kx1, kx2, kx3, kx4, kw, kb, kw3, kb3 = jax.random.split(key, 8)

    # --- case 1: small (2, 8, 32) -> resident single-block fast path --------
    b1, g1, e1 = 2, 8, 32
    x1 = jax.random.normal(kx1, (b1, g1, e1), dtype=jnp.float32)
    w1 = 1.0 + 0.1 * jax.random.normal(kw, (e1,), dtype=jnp.float32)
    bb1 = 0.1 * jax.random.normal(kb, (e1,), dtype=jnp.float32)
    out1 = normalization_forward(x1, w1, bb1)
    jax.block_until_ready(out1)
    _check("resident", out1, _reference(x1, w1, bb1))

    # --- case 2: (3, 24, 32) forced tiled: lane packing (r=4), ragged last
    #     tile, 2-way core split with a clamped empty tile, Chan combine -----
    b2, g2, e2 = 3, 24, 32
    x2 = 3.0 + jax.random.normal(kx2, (b2, g2, e2), dtype=jnp.float32)
    out2 = normalization_forward(x2, w1, bb1, row_tile=8, force_tiled=True)
    jax.block_until_ready(out2)
    _check("tiled-packed-ragged", out2, _reference(x2, w1, bb1))

    # --- case 3: (2, 10, 48) forced tiled, embed_dim that cannot be packed --
    b3, g3, e3 = 2, 10, 48
    x3 = jax.random.normal(kx3, (b3, g3, e3), dtype=jnp.float32)
    w3 = 1.0 + 0.1 * jax.random.normal(kw3, (e3,), dtype=jnp.float32)
    bb3 = 0.1 * jax.random.normal(kb3, (e3,), dtype=jnp.float32)
    out3 = normalization_forward(x3, w3, bb3, row_tile=8, force_tiled=True)
    jax.block_until_ready(out3)
    _check("tiled-unpacked", out3, _reference(x3, w3, bb3))

    # --- case 4: (4, 32, 48) forced tiled: lcm lane packing (r=8, P=384),
    #     even 2-way core split, default row_tile ----------------------------
    b4, g4, e4 = 4, 32, 48
    x4 = jax.random.normal(kx4, (b4, g4, e4), dtype=jnp.float32)
    out4 = normalization_forward(x4, w3, bb3, row_tile=8, force_tiled=True)
    jax.block_until_ready(out4)
    _check("tiled-lcm-packed", out4, _reference(x4, w3, bb3))

    print("KERNEL_OK")
</pallas_src>

<mosaic_0001>
module attributes {stable_mosaic.version = 11 : i64} {
  func.func @_bn_resident_kernel(%arg0: memref<16x32xf32, #tpu.memory_space<vmem>>, %arg1: memref<1x32xf32, #tpu.memory_space<vmem>>, %arg2: memref<1x32xf32, #tpu.memory_space<vmem>>, %arg3: memref<16x32xf32, #tpu.memory_space<vmem>>) attributes {dimension_semantics = [], scalar_prefetch = 0 : i64, scratch_operands = 0 : i64, tpu.core_type = #tpu.core_type<tc>} {
    %c0 = arith.constant 0 : index
    %c0_0 = arith.constant 0 : index
    %0 = vector.load %arg0[%c0, %c0_0] : memref<16x32xf32, #tpu.memory_space<vmem>>, vector<16x32xf32>
    %cst = arith.constant dense<0.000000e+00> : vector<32xf32>
    %1 = vector.multi_reduction <add>, %0, %cst [0] : vector<16x32xf32> to vector<32xf32>
    %2 = vector.shape_cast %1 : vector<32xf32> to vector<1x32xf32>
    %cst_1 = arith.constant 6.250000e-02 : f32
    %3 = vector.broadcast %cst_1 : f32 to vector<1x32xf32>
    %4 = arith.mulf %2, %3 : vector<1x32xf32>
    %5 = vector.broadcast %4 : vector<1x32xf32> to vector<16x32xf32>
    %6 = arith.subf %0, %5 : vector<16x32xf32>
    %7 = arith.mulf %6, %6 : vector<16x32xf32>
    %cst_2 = arith.constant dense<0.000000e+00> : vector<32xf32>
    %8 = vector.multi_reduction <add>, %7, %cst_2 [0] : vector<16x32xf32> to vector<32xf32>
    %9 = vector.shape_cast %8 : vector<32xf32> to vector<1x32xf32>
    %cst_3 = arith.constant 6.250000e-02 : f32
    %10 = vector.broadcast %cst_3 : f32 to vector<1x32xf32>
    %11 = arith.mulf %9, %10 : vector<1x32xf32>
    %cst_4 = arith.constant 9.99999974E-6 : f32
    %12 = vector.broadcast %cst_4 : f32 to vector<1x32xf32>
    %13 = arith.addf %11, %12 : vector<1x32xf32>
    %14 = math.rsqrt %13 : vector<1x32xf32>
    %c0_5 = arith.constant 0 : index
    %c0_6 = arith.constant 0 : index
    %15 = vector.load %arg1[%c0_5, %c0_6] : memref<1x32xf32, #tpu.memory_space<vmem>>, vector<1x32xf32>
    %16 = arith.mulf %15, %14 : vector<1x32xf32>
    %c0_7 = arith.constant 0 : index
    %c0_8 = arith.constant 0 : index
    %17 = vector.load %arg2[%c0_7, %c0_8] : memref<1x32xf32, #tpu.memory_space<vmem>>, vector<1x32xf32>
    %18 = arith.mulf %4, %16 : vector<1x32xf32>
    %19 = arith.subf %17, %18 : vector<1x32xf32>
    %20 = vector.broadcast %16 : vector<1x32xf32> to vector<16x32xf32>
    %21 = arith.mulf %0, %20 : vector<16x32xf32>
    %22 = vector.broadcast %19 : vector<1x32xf32> to vector<16x32xf32>
    %23 = arith.addf %21, %22 : vector<16x32xf32>
    %c0_9 = arith.constant 0 : index
    %c0_10 = arith.constant 0 : index
    %24 = vector.load %arg3[%c0_9, %c0_10] : memref<16x32xf32, #tpu.memory_space<vmem>>, vector<16x32xf32>
    tpu.vector_store %arg3[%c0_9, %c0_10], %23 {strides = array<i32>} : memref<16x32xf32, #tpu.memory_space<vmem>>, vector<16x32xf32>,
    return
  }
}

</mosaic_0001>

<llo_original>
// kernel: tpu_custom_call.1
$region0: #{tpu_custom_call.1}
  #allocation0 [shape = 'u32[]', space=smem, size = 0x4, offset = 0x4, fixed_abs, tag = 'smem constant byte address 0x4 - core index']
  #allocation1 [shape = 'u32[144,128]{1,0:T(1,128)}', space=vmem, size = 0x12000, scoped, tag = 'internal scratch']
  %s0 = inlined_call_operand.hbm [shape: f32[16,32], index: 0, kind: input, shape index: {}]
  %s1 = inlined_call_operand.vmem [shape: f32[1,32], index: 1, kind: input, shape index: {}]
  %s2 = inlined_call_operand.vmem [shape: f32[1,32], index: 2, kind: input, shape index: {}]
  %s3 = inlined_call_operand.hbm [shape: f32[16,32], index: 3, kind: output, shape index: {}]
  %s4 = sld [smem:[#allocation0]]
  $region26: #{tpu_custom_call.1} parent=0
    _
  %s6 = ssub.s32 1, %s4
  %s7 = scalar_select 0, %s6, %s4
  $region1: #{tpu_custom_call.1} parent=0
    #allocation2 [shape = 'u8[8192]{0}', space=vmem, size = 0x2000, scoped, tag = 'input window, operand 0, single buffered']
    #allocation3 [shape = 's32[1]{0}', space=sflag, size = 0x4, scoped, tag = 'scoped memory for tpu_custom_call.1']
    #allocation4 [shape = 's32[1]{0}', space=sflag, size = 0x4, scoped, tag = 'scoped memory for tpu_custom_call.1']
    #allocation5 [shape = 'u8[8192]{0}', space=vmem, size = 0x2000, scoped, tag = 'output window, operand 0, single buffered']
    %8 = vsyncpa [#allocation3], 0
    %9 = vsyncpa [#allocation4], 0
    // Predicated region
    $region2: #{tpu_custom_call.1} parent=1 // pred_check
      _
    $region3: #{tpu_custom_call.1} parent=1 // pred_check_branch
      %11 = sbr.rel (0) target = $region5
    $region4: #{tpu_custom_call.1} parent=1 // pred_region
      %s13 = ssub.s32 256, 256
      %14 = vsyncadd [#allocation3], %s13
      %s15 = sshll.u32 [#allocation2], 4
      %s16 = int_to_ptr.vmem [resolvable:$true] %s15
      %21 = dma.hbm_to_vmem [thread:$0]  %s0, 256, %s16, [#allocation3], 128, 128, 8
    $region5: #{tpu_custom_call.1} parent=1 // pred_fallthru
      _
    // Predicated region
    $region6: #{tpu_custom_call.1} parent=1 // pred_check
      _
    $region7: #{tpu_custom_call.1} parent=1 // pred_check_branch
      %23 = sbr.rel (0) target = $region9
    $region8: #{tpu_custom_call.1} parent=1 // pred_region
      _
    $region9: #{tpu_custom_call.1} parent=1 // pred_fallthru
      _
    // Predicated region
    $region10: #{tpu_custom_call.1} parent=1 // pred_check
      _
    $region11: #{tpu_custom_call.1} parent=1 // pred_check_branch
      %25 = sbr.rel (0) target = $region13
    $region12: #{tpu_custom_call.1} parent=1 // pred_region
      _
    $region13: #{tpu_custom_call.1} parent=1 // pred_fallthru
      _
    // Predicated region
    $region14: #{tpu_custom_call.1} parent=1 // pred_check
      _
    $region15: #{tpu_custom_call.1} parent=1 // pred_check_branch
      %27 = sbr.rel (0) target = $region17
    $region16: #{tpu_custom_call.1} parent=1 // pred_region
      %28 = dma.done [#allocation3], 256
    $region17: #{tpu_custom_call.1} parent=1 // pred_fallthru
      _
    %v29 = vld [vmem:[#allocation2] sm:$0xff]
    %v30 = vld [vmem:[#allocation2 + $0x8] sm:$0xff]
    %vm31 = vcmask 261120
    %v32 = vsel %vm31, %v29, 0.0
    %v33 = vsel %vm31, %v30, 0.0
    %v34 = vadd.f32 %v32, %v33
    %v35 = vrot.slane %v34, 4
    %v36 = vadd.f32 %v34, %v35
    %v37 = vrot.slane %v36, 2
    %v38 = vadd.f32 %v36, %v37
    %v39 = vrot.slane %v38, 1
    %v40 = vadd.f32 %v38, %v39
    %v41 = vmul.f32 %v40, 0.0625
    %v42 = vsub.f32 %v29, %v41
    %v43 = vsub.f32 %v30, %v41
    %v44 = vmul.f32 %v42, %v42
    %v45 = vmul.f32 %v43, %v43
    %v46 = vsel %vm31, %v44, 0.0
    %v47 = vsel %vm31, %v45, 0.0
    %v48 = vadd.f32 %v46, %v47
    %v49 = vrot.slane %v48, 4
    %v50 = vadd.f32 %v48, %v49
    %v51 = vrot.slane %v50, 2
    %v52 = vadd.f32 %v50, %v51
    %v53 = vrot.slane %v52, 1
    %v54 = vadd.f32 %v52, %v53
    %v55 = vmul.f32 %v54, 0.0625
    %v56 = vadd.f32 %v55, 1e-05
    %v57 = vrsqrt.pop %v56
    %v58 = vld [vmem:[%s1] sm:$0x1]
    %v59 = vmul.f32 %v58, %v57
    %v60 = vld [vmem:[%s2] sm:$0x1]
    %v61 = vmul.f32 %v41, %v59
    %v62 = vsub.f32 %v60, %v61
    %v64 = vlaneseq
    %v65 = vshrl.u32 %v64, 7
    %v66 = vsub.s32 0, %v65
    %v67 = vrot.slane %v59, %v66
    %v69 = vmul.f32 %v29, %v67
    %v70 = vmul.f32 %v30, %v67
    %v72 = vlaneseq
    %v73 = vshrl.u32 %v72, 7
    %v74 = vsub.s32 0, %v73
    %v75 = vrot.slane %v62, %v74
    %v77 = vadd.f32 %v69, %v75
    %v78 = vadd.f32 %v70, %v75
    %79 = vst.msk [vmem:[#allocation5] sm:$0xff] %vm31, %v77
    %80 = vst.msk [vmem:[#allocation5 + $0x8] sm:$0xff] %vm31, %v78
    // Predicated region
    $region18: #{tpu_custom_call.1} parent=1 // pred_check
      _
    $region19: #{tpu_custom_call.1} parent=1 // pred_check_branch
      %82 = sbr.rel (0) target = $region21
    $region20: #{tpu_custom_call.1} parent=1 // pred_region
      %s84 = ssub.s32 256, 256
      %85 = vsyncadd [#allocation4], %s84
      %s86 = sshll.u32 [#allocation5], 4
      %s87 = int_to_ptr.vmem [resolvable:$true] %s86
      %92 = dma.vmem_to_hbm [thread:$0]  %s87, 256, %s3, [#allocation4], 128, 128, 8
    $region21: #{tpu_custom_call.1} parent=1 // pred_fallthru
      _
    // Predicated region
    $region22: #{tpu_custom_call.1} parent=1 // pred_check
      _
    $region23: #{tpu_custom_call.1} parent=1 // pred_check_branch
      %94 = sbr.rel (0) target = $region25
    $region24: #{tpu_custom_call.1} parent=1 // pred_region
      %95 = dma.done [#allocation4], 256
    $region25: #{tpu_custom_call.1} parent=1 // pred_fallthru
      _
    %96 = vsyncpa [#allocation3], 1
    %97 = vsyncpa [#allocation4], 1

</llo_original>
